<compile_context>
chip_gen: v7x
topology: tpu7x:2x2x1
jax: 0.10.0
libtpu: 0.0.40
codegen_flags: <defaults>
</compile_context>

<pallas_src>
import jax
import jax.numpy as jnp
from jax.experimental import pallas as pl
from jax.experimental.pallas import tpu as pltpu


def _triplet_softplus_kernel(trip_ref, xq_ref, xv_ref, out_ref):
    # trip_ref : VMEM (3, block_t) int32  -- rows [i ; j ; k], triplets on the lane axis
    # xq_ref   : VMEM (d+1, N) f32        -- [-2*X^T ; ones]      (resident across tiles)
    # xv_ref   : VMEM (d+1, N) f32        -- [  X^T  ; ||x||^2 ]  (resident across tiles)
    # out_ref  : VMEM (1, block_t) f32    -- per-triplet softplus(z) for this tile
    n = xq_ref.shape[1]
    bt = trip_ref.shape[1]

    trips = trip_ref[...]                                           # (3, bt) int32
    row_ids = jax.lax.broadcasted_iota(jnp.int32, (n, bt), 0)       # feature-row index

    # One-hot gather matrices (MXU RHS). Invalid indices (<0 or >=N) match nothing.
    p_i = (row_ids == trips[0:1, :]).astype(jnp.float32)            # (N, bt)
    p_d = ((row_ids == trips[1:2, :]).astype(jnp.float32)
           - (row_ids == trips[2:3, :]).astype(jnp.float32))        # (N, bt): +1 at j, -1 at k

    q = jnp.dot(xq_ref[...], p_i,
                preferred_element_type=jnp.float32,
                precision=jax.lax.Precision.HIGHEST)                # (d+1, bt): [-2*x_i ; 1]
    v = jnp.dot(xv_ref[...], p_d,
                preferred_element_type=jnp.float32,
                precision=jax.lax.Precision.HIGHEST)                # (d+1, bt): [x_j-x_k ; n_j-n_k]

    # z = (||x_j||^2 - ||x_k||^2) - 2 * x_i . (x_j - x_k) = dist(i,j) - dist(i,k)
    z = jnp.sum(q * v, axis=0, keepdims=True)                       # (1, bt)

    # Numerically stable softplus: log(1 + exp(z)) = max(z, 0) + log(1 + exp(-|z|))
    out_ref[...] = jnp.maximum(z, 0.0) + jnp.log(1.0 + jnp.exp(-jnp.abs(z)))


def triplet_loss(x, triplets, *, block_t=128):
    """x: (N, d) float features; triplets: (T, 3) int (i, j, k) indices. Returns scalar loss."""
    x = x.astype(jnp.float32)
    n, d = x.shape
    t_count = int(triplets.shape[0])
    t_pad = ((t_count + block_t - 1) // block_t) * block_t

    # (3, t_pad) int32, triplets on the lane axis; padding indices are 0 (valid, masked later).
    trips = jnp.zeros((t_pad, 3), jnp.int32).at[:t_count].set(triplets.astype(jnp.int32))
    trips = jnp.transpose(trips)

    xt = jnp.transpose(x)                                            # (d, N)
    xn = jnp.sum(x * x, axis=1)[None, :]                             # (1, N) row norms
    xq = jnp.concatenate([-2.0 * xt, jnp.ones((1, n), jnp.float32)], axis=0)   # (d+1, N)
    xv = jnp.concatenate([xt, xn], axis=0)                                     # (d+1, N)

    grid = (t_pad // block_t,)
    sp = pl.pallas_call(
        _triplet_softplus_kernel,
        grid_spec=pltpu.PrefetchScalarGridSpec(
            num_scalar_prefetch=0,
            grid=grid,
            in_specs=[
                pl.BlockSpec((3, block_t), lambda s: (0, s)),        # triplet indices, per tile
                pl.BlockSpec((d + 1, n), lambda s: (0, 0)),          # resident query matrix
                pl.BlockSpec((d + 1, n), lambda s: (0, 0)),          # resident value matrix
            ],
            out_specs=pl.BlockSpec((1, block_t), lambda s: (0, s)),  # lane-dense per-tile output
        ),
        out_shape=jax.ShapeDtypeStruct((1, t_pad), jnp.float32),
        # No cross-tile accumulator -> grid axis is parallel (2 TCs on v7x; harmless elsewhere).
        compiler_params=pltpu.CompilerParams(dimension_semantics=("parallel",)),
    )(trips, xq, xv)

    # Mask the padded triplets (static slice), reduce, and normalize in the wrapper.
    return jnp.sum(sp[0, :t_count]) / t_count


def _reference_loss(x, triplets):
    """Pure-JAX mirror of MyTripletLossFunc.forward (pairwise_distances + triplet loop)."""
    x = x.astype(jnp.float32)
    xn = jnp.sum(x * x, axis=1).reshape(-1, 1)
    gram = jnp.matmul(x, x.T, precision=jax.lax.Precision.HIGHEST)
    dist = xn + xn.reshape(1, -1) - 2.0 * gram
    dist = dist - jnp.diag(jnp.diag(dist))
    dist = jnp.clip(dist, 0.0, jnp.inf)
    i, j, k = triplets[:, 0], triplets[:, 1], triplets[:, 2]
    per_trip = jnp.log(1.0 + jnp.exp(dist[i, j] - dist[i, k]))
    return jnp.sum(per_trip) / triplets.shape[0]


if __name__ == "__main__":
    key = jax.random.PRNGKey(0)
    kx, kt = jax.random.split(key)
    N, D, T = 16, 32, 37            # T deliberately not a multiple of the triplet tile
    x = jax.random.normal(kx, (N, D), dtype=jnp.float32)
    triplets = jax.random.randint(kt, (T, 3), 0, N, dtype=jnp.int32)

    loss = triplet_loss(x, triplets, block_t=128)
    jax.block_until_ready(loss)

    ref = _reference_loss(x, triplets)
    assert jnp.allclose(loss, ref, rtol=1e-4, atol=1e-4), (loss, ref)
    print("KERNEL_OK")
</pallas_src>

<mosaic_0001>
module attributes {stable_mosaic.version = 11 : i64} {
  func.func @_triplet_softplus_kernel(%arg0: i32, %arg1: memref<3x128xi32, #tpu.memory_space<vmem>>, %arg2: memref<33x16xf32, #tpu.memory_space<vmem>>, %arg3: memref<33x16xf32, #tpu.memory_space<vmem>>, %arg4: memref<1x128xf32, #tpu.memory_space<vmem>>) attributes {dimension_semantics = [#tpu.dimension_semantics<parallel>], iteration_bounds = array<i64: 1>, scalar_prefetch = 0 : i64, scratch_operands = 0 : i64, tpu.core_type = #tpu.core_type<tc>, window_params = [{transform_indices = @transform_0, window_bounds = array<i64: 3, 128>}, {pipeline_mode = #tpu.pipeline_mode<synchronous>, transform_indices = @transform_1, window_bounds = array<i64: 33, 16>}, {pipeline_mode = #tpu.pipeline_mode<synchronous>, transform_indices = @transform_2, window_bounds = array<i64: 33, 16>}, {transform_indices = @transform_3, window_bounds = array<i64: 1, 128>}]} {
    %c0 = arith.constant 0 : index
    %c0_0 = arith.constant 0 : index
    %0 = vector.load %arg1[%c0, %c0_0] : memref<3x128xi32, #tpu.memory_space<vmem>>, vector<3x128xi32>
    %1 = tpu.iota {dimensions = array<i32: 0>} : vector<16x128xi32>
    %2 = vector.extract_strided_slice %0 {offsets = [0, 0], sizes = [1, 128], strides = [1, 1]} : vector<3x128xi32> to vector<1x128xi32>
    %3 = vector.broadcast %2 : vector<1x128xi32> to vector<16x128xi32>
    %4 = arith.cmpi eq, %1, %3 : vector<16x128xi32>
    %5 = arith.extui %4 : vector<16x128xi1> to vector<16x128xi32>
    %6 = arith.sitofp %5 : vector<16x128xi32> to vector<16x128xf32>
    %7 = vector.extract_strided_slice %0 {offsets = [1, 0], sizes = [1, 128], strides = [1, 1]} : vector<3x128xi32> to vector<1x128xi32>
    %8 = vector.broadcast %7 : vector<1x128xi32> to vector<16x128xi32>
    %9 = arith.cmpi eq, %1, %8 : vector<16x128xi32>
    %10 = arith.extui %9 : vector<16x128xi1> to vector<16x128xi32>
    %11 = arith.sitofp %10 : vector<16x128xi32> to vector<16x128xf32>
    %12 = vector.extract_strided_slice %0 {offsets = [2, 0], sizes = [1, 128], strides = [1, 1]} : vector<3x128xi32> to vector<1x128xi32>
    %13 = vector.broadcast %12 : vector<1x128xi32> to vector<16x128xi32>
    %14 = arith.cmpi eq, %1, %13 : vector<16x128xi32>
    %15 = arith.extui %14 : vector<16x128xi1> to vector<16x128xi32>
    %16 = arith.sitofp %15 : vector<16x128xi32> to vector<16x128xf32>
    %17 = arith.subf %11, %16 : vector<16x128xf32>
    %c0_1 = arith.constant 0 : index
    %c0_2 = arith.constant 0 : index
    %18 = vector.load %arg2[%c0_1, %c0_2] : memref<33x16xf32, #tpu.memory_space<vmem>>, vector<33x16xf32>
    %cst = arith.constant dense<0.000000e+00> : vector<33x128xf32>
    %19 = tpu.matmul %18, %6, %cst {dimension_numbers = #tpu.dot_dimension_numbers<[1], [0], [0], [1], [0, 0, 1, 1], [], []>, precision = #tpu.contract_precision<fp32>} : vector<33x16xf32>, vector<16x128xf32>, vector<33x128xf32> -> vector<33x128xf32>
    %c0_3 = arith.constant 0 : index
    %c0_4 = arith.constant 0 : index
    %20 = vector.load %arg3[%c0_3, %c0_4] : memref<33x16xf32, #tpu.memory_space<vmem>>, vector<33x16xf32>
    %cst_5 = arith.constant dense<0.000000e+00> : vector<33x128xf32>
    %21 = tpu.matmul %20, %17, %cst_5 {dimension_numbers = #tpu.dot_dimension_numbers<[1], [0], [0], [1], [0, 0, 1, 1], [], []>, precision = #tpu.contract_precision<fp32>} : vector<33x16xf32>, vector<16x128xf32>, vector<33x128xf32> -> vector<33x128xf32>
    %22 = arith.mulf %19, %21 : vector<33x128xf32>
    %cst_6 = arith.constant dense<0.000000e+00> : vector<128xf32>
    %23 = vector.multi_reduction <add>, %22, %cst_6 [0] : vector<33x128xf32> to vector<128xf32>
    %24 = vector.shape_cast %23 : vector<128xf32> to vector<1x128xf32>
    %cst_7 = arith.constant 0.000000e+00 : f32
    %25 = vector.broadcast %cst_7 : f32 to vector<1x128xf32>
    %26 = arith.maximumf %24, %25 : vector<1x128xf32>
    %27 = math.absf %24 : vector<1x128xf32>
    %cst_8 = arith.constant 0.000000e+00 : f32
    %28 = vector.broadcast %cst_8 : f32 to vector<1x128xf32>
    %29 = arith.subf %28, %27 : vector<1x128xf32>
    %30 = math.exp %29 : vector<1x128xf32>
    %cst_9 = arith.constant 1.000000e+00 : f32
    %31 = vector.broadcast %cst_9 : f32 to vector<1x128xf32>
    %32 = arith.addf %31, %30 : vector<1x128xf32>
    %33 = math.log %32 : vector<1x128xf32>
    %34 = arith.addf %26, %33 : vector<1x128xf32>
    %c0_10 = arith.constant 0 : index
    %c0_11 = arith.constant 0 : index
    %35 = vector.load %arg4[%c0_10, %c0_11] : memref<1x128xf32, #tpu.memory_space<vmem>>, vector<1x128xf32>
    tpu.vector_store %arg4[%c0_10, %c0_11], %34 {strides = array<i32>} : memref<1x128xf32, #tpu.memory_space<vmem>>, vector<1x128xf32>,
    return
  }
  func.func @transform_0(%arg0: i32) -> (i32, i32) {
    %c0_i32 = arith.constant 0 : i32
    %c0_i32_0 = arith.constant 0 : i32
    return %c0_i32, %arg0 : i32, i32
  }
  func.func @transform_1(%arg0: i32) -> (i32, i32) {
    %c0_i32 = arith.constant 0 : i32
    %c0_i32_0 = arith.constant 0 : i32
    %c0_i32_1 = arith.constant 0 : i32
    return %c0_i32, %c0_i32_0 : i32, i32
  }
  func.func @transform_2(%arg0: i32) -> (i32, i32) {
    %c0_i32 = arith.constant 0 : i32
    %c0_i32_0 = arith.constant 0 : i32
    %c0_i32_1 = arith.constant 0 : i32
    return %c0_i32, %c0_i32_0 : i32, i32
  }
  func.func @transform_3(%arg0: i32) -> (i32, i32) {
    %c0_i32 = arith.constant 0 : i32
    %c0_i32_0 = arith.constant 0 : i32
    return %c0_i32, %arg0 : i32, i32
  }
}

</mosaic_0001>

<llo_original>
// kernel: tpu_custom_call.1
$region0: #{tpu_custom_call.1}
  #allocation0 [shape = 'u32[]', space=smem, size = 0x4, offset = 0x4, fixed_abs, tag = 'smem constant byte address 0x4 - core index']
  #allocation1 [shape = 'u32[144,128]{1,0:T(1,128)}', space=vmem, size = 0x12000, scoped, tag = 'internal scratch']
  %s0 = inlined_call_operand.vmem [shape: s32[3,128], index: 0, kind: input, shape index: {}]
  %s1 = inlined_call_operand.vmem [shape: f32[33,16], index: 1, kind: input, shape index: {}]
  %s2 = inlined_call_operand.vmem [shape: f32[33,16], index: 2, kind: input, shape index: {}]
  %s3 = inlined_call_operand.hbm [shape: f32[1,128], index: 3, kind: output, shape index: {}]
  %s4 = sld [smem:[#allocation0]]
  $region22: #{tpu_custom_call.1} parent=0
    _
  %s6 = ssub.s32 1, %s4
  %s7 = scalar_select 0, %s6, %s4
  $region1: #{tpu_custom_call.1} parent=0
    #allocation2 [shape = 'u8[512]{0}', space=vmem, size = 0x400, scoped, tag = 'output window, operand 0, single buffered']
    #allocation3 [shape = 's32[1]{0}', space=sflag, size = 0x4, scoped, tag = 'scoped memory for tpu_custom_call.1']
    %8 = vsyncpa [#allocation3], 0
    // Predicated region
    $region2: #{tpu_custom_call.1} parent=1 // pred_check
      _
    $region3: #{tpu_custom_call.1} parent=1 // pred_check_branch
      %10 = sbr.rel (0) target = $region5
    $region4: #{tpu_custom_call.1} parent=1 // pred_region
      _
    $region5: #{tpu_custom_call.1} parent=1 // pred_fallthru
      _
    // Predicated region
    $region6: #{tpu_custom_call.1} parent=1 // pred_check
      _
    $region7: #{tpu_custom_call.1} parent=1 // pred_check_branch
      %12 = sbr.rel (0) target = $region9
    $region8: #{tpu_custom_call.1} parent=1 // pred_region
      _
    $region9: #{tpu_custom_call.1} parent=1 // pred_fallthru
      _
    // Predicated region
    $region10: #{tpu_custom_call.1} parent=1 // pred_check
      _
    $region11: #{tpu_custom_call.1} parent=1 // pred_check_branch
      %14 = sbr.rel (0) target = $region13
    $region12: #{tpu_custom_call.1} parent=1 // pred_region
      _
    $region13: #{tpu_custom_call.1} parent=1 // pred_fallthru
      _
    %v15 = vld [vmem:[%s0] sm:$0x7]
    %v16 = vlaneseq
    %v17 = vshrl.u32 %v16, 7
    %v18 = vadd.s32 %v17, 8
    %v19 = vlaneseq
    %v20 = vshrl.u32 %v19, 7
    %v21 = vsub.s32 0, %v20
    %v22 = vrot.slane %v15, %v21
    %vm23 = vcmp.eq.s32.totalorder %v17, %v22
    %vm24 = vcmp.eq.s32.totalorder %v18, %v22
    %v25 = vsel %vm23, 1, 0
    %v26 = vsel %vm24, 1, 0
    %v27 = vcvt.s32.f32 %v25
    %v28 = vcvt.s32.f32 %v26
    %v29 = vlaneseq
    %v30 = vshrl.u32 %v29, 7
    %v31 = vsub.s32 1, %v30
    %v32 = vrot.slane %v15, %v31
    %vm33 = vcmp.eq.s32.totalorder %v17, %v32
    %vm34 = vcmp.eq.s32.totalorder %v18, %v32
    %v35 = vsel %vm33, 1, 0
    %v36 = vsel %vm34, 1, 0
    %v37 = vcvt.s32.f32 %v35
    %v38 = vcvt.s32.f32 %v36
    %v39 = vlaneseq
    %v40 = vshrl.u32 %v39, 7
    %v41 = vsub.s32 2, %v40
    %v42 = vrot.slane %v15, %v41
    %vm43 = vcmp.eq.s32.totalorder %v17, %v42
    %vm44 = vcmp.eq.s32.totalorder %v18, %v42
    %v45 = vsel %vm43, 1, 0
    %v46 = vsel %vm44, 1, 0
    %v47 = vcvt.s32.f32 %v45
    %v48 = vcvt.s32.f32 %v46
    %v49 = vsub.f32 %v37, %v47
    %v50 = vsub.f32 %v38, %v48
    %v51 = vld [vmem:[%s1] sm:$0xff]
    %v52 = vld [vmem:[%s1 + $0x8] sm:$0xff]
    %v53 = vld [vmem:[%s1 + $0x10] sm:$0xff]
    %v54 = vld [vmem:[%s1 + $0x18] sm:$0xff]
    %v55 = vld [vmem:[%s1 + $0x20] sm:$0x1]
    %vm56 = vcmask 130048
    %v58 = vsel %vm56, %v51, 0
    %v61 = vsel %vm56, %v52, 0
    %v64 = vsel %vm56, %v53, 0
    %v67 = vsel %vm56, %v54, 0
    %v70 = vsel %vm56, %v55, 0
    %72 = vmatprep.subr.mxu0 0.0
    %v73 = vand.u32 %v27, 4294901760
    %74 = vmatpush1.msra.mxu0 %v73
    %75 = vmatprep.subr.mxu0 0.0
    %v76 = vand.u32 %v28, 4294901760
    %77 = vmatpush1.msra.mxu0 %v76
    %78 = vmatprep.subr.mxu0 0.0
    %79 = vmatpush1.msra.mxu0 0.0
    %80 = vmatprep.subr.mxu0 0.0
    %81 = vmatpush1.msra.mxu0 0.0
    %82 = vmatprep.subr.mxu0 0.0
    %83 = vmatpush1.msra.mxu0 0.0
    %84 = vmatprep.subr.mxu0 0.0
    %85 = vmatpush1.msra.mxu0 0.0
    %86 = vmatprep.subr.mxu0 0.0
    %87 = vmatpush1.msra.mxu0 0.0
    %88 = vmatprep.subr.mxu0 0.0
    %89 = vmatpush1.msra.mxu0 0.0
    %90 = vmatprep.subr.mxu0 0.0
    %91 = vmatpush1.msra.mxu0 0.0
    %92 = vmatprep.subr.mxu0 0.0
    %93 = vmatpush1.msra.mxu0 0.0
    %94 = vmatprep.subr.mxu0 0.0
    %95 = vmatpush1.msra.mxu0 0.0
    %96 = vmatprep.subr.mxu0 0.0
    %97 = vmatpush1.msra.mxu0 0.0
    %98 = vmatprep.subr.mxu0 0.0
    %99 = vmatpush1.msra.mxu0 0.0
    %100 = vmatprep.subr.mxu0 0.0
    %101 = vmatpush1.msra.mxu0 0.0
    %102 = vmatprep.subr.mxu0 0.0
    %103 = vmatpush1.msra.mxu0 0.0
    %104 = vmatprep.subr.mxu0 0.0
    %105 = vmatpush1.msra.mxu0 0.0
    %106 = vmatprep.subr.mxu0 0.0
    %107 = vmatpush1.msra.mxu0 0.0
    %108 = vmatprep.subr.mxu0 0.0
    %109 = vmatpush1.msra.mxu0 0.0
    %110 = vmatprep.subr.mxu0 0.0
    %111 = vmatpush1.msra.mxu0 0.0
    %112 = vmatprep.subr.mxu0 0.0
    %113 = vmatpush1.msra.mxu0 0.0
    %114 = vmatprep.subr.mxu0 0.0
    %115 = vmatpush1.msra.mxu0 0.0
    %116 = vmatprep.subr.mxu0 0.0
    %117 = vmatpush1.msra.mxu0 0.0
    %118 = vmatprep.subr.mxu0 0.0
    %119 = vmatpush1.msra.mxu0 0.0
    %120 = vmatprep.subr.mxu0 0.0
    %121 = vmatpush1.msra.mxu0 0.0
    %122 = vmatprep.subr.mxu0 0.0
    %123 = vmatpush1.msra.mxu0 0.0
    %124 = vmatprep.subr.mxu0 0.0
    %125 = vmatpush1.msra.mxu0 0.0
    %126 = vmatprep.subr.mxu0 0.0
    %127 = vmatpush1.msra.mxu0 0.0
    %128 = vmatprep.subr.mxu0 0.0
    %129 = vmatpush1.msra.mxu0 0.0
    %130 = vmatprep.subr.mxu0 0.0
    %131 = vmatpush1.msra.mxu0 0.0
    %132 = vmatprep.subr.mxu0 0.0
    %133 = vmatpush1.msra.mxu0 0.0
    %134 = vmatprep.subr.mxu0 0.0
    %135 = vmatpush1.msra.mxu0 0.0
    %136 = vmatprep.subr.mxu0 0.0
    %137 = vmatpush1.msra.mxu0 0.0
    %138 = vmatprep.mubr.f32.mxu0 0.0
    %v139 = vand.u32 %v58, 4294901760
    %v140 = vsub.f32 %v58, %v139
    %v141 = vand.u32 %v140, 4294901760
    %v142 = vsub.f32 %v140, %v141
    %v143 = vand.u32 %v142, 4294901760
    %144 = vmatmul.mubr.f32.gmra.mrb[0].mxu0 %v143
    %v145 = vpop.f32.mrb[0].mxu0
    %v146 = vadd.f32 0.0, %v145
    %v147 = vpop.f32.mrb[0].mxu0
    %148 = vmatprep.mubr.f32.mxu0 0.0
    %v149 = vand.u32 %v61, 4294901760
    %v150 = vsub.f32 %v61, %v149
    %v151 = vand.u32 %v150, 4294901760
    %v152 = vsub.f32 %v150, %v151
    %v153 = vand.u32 %v152, 4294901760
    %154 = vmatmul.mubr.f32.gmra.mrb[0].mxu0 %v153
    %v155 = vpop.f32.mrb[0].mxu0
    %v156 = vadd.f32 0.0, %v155
    %v157 = vpop.f32.mrb[0].mxu0
    %158 = vmatprep.mubr.f32.mxu0 0.0
    %v159 = vand.u32 %v64, 4294901760
    %v160 = vsub.f32 %v64, %v159
    %v161 = vand.u32 %v160, 4294901760
    %v162 = vsub.f32 %v160, %v161
    %v163 = vand.u32 %v162, 4294901760
    %164 = vmatmul.mubr.f32.gmra.mrb[0].mxu0 %v163
    %v165 = vpop.f32.mrb[0].mxu0
    %v166 = vadd.f32 0.0, %v165
    %v167 = vpop.f32.mrb[0].mxu0
    %168 = vmatprep.mubr.f32.mxu0 0.0
    %v169 = vand.u32 %v67, 4294901760
    %v170 = vsub.f32 %v67, %v169
    %v171 = vand.u32 %v170, 4294901760
    %v172 = vsub.f32 %v170, %v171
    %v173 = vand.u32 %v172, 4294901760
    %174 = vmatmul.mubr.f32.gmra.mrb[0].mxu0 %v173
    %v175 = vpop.f32.mrb[0].mxu0
    %v176 = vadd.f32 0.0, %v175
    %v177 = vpop.f32.mrb[0].mxu0
    %178 = vmatprep.mubr.f32.mxu0 0.0
    %v179 = vand.u32 %v70, 4294901760
    %v180 = vsub.f32 %v70, %v179
    %v181 = vand.u32 %v180, 4294901760
    %v182 = vsub.f32 %v180, %v181
    %v183 = vand.u32 %v182, 4294901760
    %184 = vmatmul.mubr.f32.gmra.mrb[0].mxu0 %v183
    %v185 = vpop.f32.mrb[0].mxu0
    %v186 = vadd.f32 0.0, %v185
    %v187 = vpop.f32.mrb[0].mxu0
    %188 = vdwg.mxu0
    %189 = vmatprep.subr.mxu0 0.0
    %v190 = vand.u32 %v27, 4294901760
    %v191 = vsub.f32 %v27, %v190
    %v192 = vand.u32 %v191, 4294901760
    %v193 = vsub.f32 %v191, %v192
    %v194 = vand.u32 %v193, 4294901760
    %195 = vmatpush1.msra.mxu0 %v194
    %196 = vmatprep.subr.mxu0 0.0
    %v197 = vand.u32 %v28, 4294901760
    %v198 = vsub.f32 %v28, %v197
    %v199 = vand.u32 %v198, 4294901760
    %v200 = vsub.f32 %v198, %v199
    %v201 = vand.u32 %v200, 4294901760
    %202 = vmatpush1.msra.mxu0 %v201
    %203 = vmatprep.subr.mxu0 0.0
    %204 = vmatpush1.msra.mxu0 0.0
    %205 = vmatprep.subr.mxu0 0.0
    %206 = vmatpush1.msra.mxu0 0.0
    %207 = vmatprep.subr.mxu0 0.0
    %208 = vmatpush1.msra.mxu0 0.0
    %209 = vmatprep.subr.mxu0 0.0
    %210 = vmatpush1.msra.mxu0 0.0
    %211 = vmatprep.subr.mxu0 0.0
    %212 = vmatpush1.msra.mxu0 0.0
    %213 = vmatprep.subr.mxu0 0.0
    %214 = vmatpush1.msra.mxu0 0.0
    %215 = vmatprep.subr.mxu0 0.0
    %216 = vmatpush1.msra.mxu0 0.0
    %217 = vmatprep.subr.mxu0 0.0
    %218 = vmatpush1.msra.mxu0 0.0
    %219 = vmatprep.subr.mxu0 0.0
    %220 = vmatpush1.msra.mxu0 0.0
    %221 = vmatprep.subr.mxu0 0.0
    %222 = vmatpush1.msra.mxu0 0.0
    %223 = vmatprep.subr.mxu0 0.0
    %224 = vmatpush1.msra.mxu0 0.0
    %225 = vmatprep.subr.mxu0 0.0
    %226 = vmatpush1.msra.mxu0 0.0
    %227 = vmatprep.subr.mxu0 0.0
    %228 = vmatpush1.msra.mxu0 0.0
    %229 = vmatprep.subr.mxu0 0.0
    %230 = vmatpush1.msra.mxu0 0.0
    %231 = vmatprep.subr.mxu0 0.0
    %232 = vmatpush1.msra.mxu0 0.0
    %233 = vmatprep.subr.mxu0 0.0
    %234 = vmatpush1.msra.mxu0 0.0
    %235 = vmatprep.subr.mxu0 0.0
    %236 = vmatpush1.msra.mxu0 0.0
    %237 = vmatprep.subr.mxu0 0.0
    %238 = vmatpush1.msra.mxu0 0.0
    %239 = vmatprep.subr.mxu0 0.0
    %240 = vmatpush1.msra.mxu0 0.0
    %241 = vmatprep.subr.mxu0 0.0
    %242 = vmatpush1.msra.mxu0 0.0
    %243 = vmatprep.subr.mxu0 0.0
    %244 = vmatpush1.msra.mxu0 0.0
    %245 = vmatprep.subr.mxu0 0.0
    %246 = vmatpush1.msra.mxu0 0.0
    %247 = vmatprep.subr.mxu0 0.0
    %248 = vmatpush1.msra.mxu0 0.0
    %249 = vmatprep.subr.mxu0 0.0
    %250 = vmatpush1.msra.mxu0 0.0
    %251 = vmatprep.subr.mxu0 0.0
    %252 = vmatpush1.msra.mxu0 0.0
    %253 = vmatprep.subr.mxu0 0.0
    %254 = vmatpush1.msra.mxu0 0.0
    %255 = vmatprep.subr.mxu0 0.0
    %256 = vmatpush1.msra.mxu0 0.0
    %257 = vmatprep.subr.mxu0 0.0
    %258 = vmatpush1.msra.mxu0 0.0
    %259 = vmatprep.subr.mxu0 0.0
    %260 = vmatpush1.msra.mxu0 0.0
    %261 = vmatprep.subr.mxu0 0.0
    %262 = vmatpush1.msra.mxu0 0.0
    %263 = vmatprep.mubr.f32.mxu0 0.0
    %v264 = vand.u32 %v58, 4294901760
    %265 = vmatmul.mubr.f32.gmra.mrb[0].mxu0 %v264
    %v266 = vpop.f32.mrb[0].mxu0
    %v267 = vadd.f32 %v146, %v266
    %v268 = vpop.f32.mrb[0].mxu0
    %269 = vmatprep.mubr.f32.mxu0 0.0
    %v270 = vand.u32 %v61, 4294901760
    %271 = vmatmul.mubr.f32.gmra.mrb[0].mxu0 %v270
    %v272 = vpop.f32.mrb[0].mxu0
    %v273 = vadd.f32 %v156, %v272
    %v274 = vpop.f32.mrb[0].mxu0
    %275 = vmatprep.mubr.f32.mxu0 0.0
    %v276 = vand.u32 %v64, 4294901760
    %277 = vmatmul.mubr.f32.gmra.mrb[0].mxu0 %v276
    %v278 = vpop.f32.mrb[0].mxu0
    %v279 = vadd.f32 %v166, %v278
    %v280 = vpop.f32.mrb[0].mxu0
    %281 = vmatprep.mubr.f32.mxu0 0.0
    %v282 = vand.u32 %v67, 4294901760
    %283 = vmatmul.mubr.f32.gmra.mrb[0].mxu0 %v282
    %v284 = vpop.f32.mrb[0].mxu0
    %v285 = vadd.f32 %v176, %v284
    %v286 = vpop.f32.mrb[0].mxu0
    %287 = vmatprep.mubr.f32.mxu0 0.0
    %v288 = vand.u32 %v70, 4294901760
    %289 = vmatmul.mubr.f32.gmra.mrb[0].mxu0 %v288
    %v290 = vpop.f32.mrb[0].mxu0
    %v291 = vadd.f32 %v186, %v290
    %v292 = vpop.f32.mrb[0].mxu0
    %293 = vdwg.mxu0
    %294 = vmatprep.subr.mxu0 0.0
    %v295 = vand.u32 %v27, 4294901760
    %v296 = vsub.f32 %v27, %v295
    %297 = vmatpush1.msra.mxu0 %v296
    %298 = vmatprep.subr.mxu0 0.0
    %v299 = vand.u32 %v28, 4294901760
    %v300 = vsub.f32 %v28, %v299
    %301 = vmatpush1.msra.mxu0 %v300
    %302 = vmatprep.subr.mxu0 0.0
    %303 = vmatpush1.msra.mxu0 0.0
    %304 = vmatprep.subr.mxu0 0.0
    %305 = vmatpush1.msra.mxu0 0.0
    %306 = vmatprep.subr.mxu0 0.0
    %307 = vmatpush1.msra.mxu0 0.0
    %308 = vmatprep.subr.mxu0 0.0
    %309 = vmatpush1.msra.mxu0 0.0
    %310 = vmatprep.subr.mxu0 0.0
    %311 = vmatpush1.msra.mxu0 0.0
    %312 = vmatprep.subr.mxu0 0.0
    %313 = vmatpush1.msra.mxu0 0.0
    %314 = vmatprep.subr.mxu0 0.0
    %315 = vmatpush1.msra.mxu0 0.0
    %316 = vmatprep.subr.mxu0 0.0
    %317 = vmatpush1.msra.mxu0 0.0
    %318 = vmatprep.subr.mxu0 0.0
    %319 = vmatpush1.msra.mxu0 0.0
    %320 = vmatprep.subr.mxu0 0.0
    %321 = vmatpush1.msra.mxu0 0.0
    %322 = vmatprep.subr.mxu0 0.0
    %323 = vmatpush1.msra.mxu0 0.0
    %324 = vmatprep.subr.mxu0 0.0
    %325 = vmatpush1.msra.mxu0 0.0
    %326 = vmatprep.subr.mxu0 0.0
    %327 = vmatpush1.msra.mxu0 0.0
    %328 = vmatprep.subr.mxu0 0.0
    %329 = vmatpush1.msra.mxu0 0.0
    %330 = vmatprep.subr.mxu0 0.0
    %331 = vmatpush1.msra.mxu0 0.0
    %332 = vmatprep.subr.mxu0 0.0
    %333 = vmatpush1.msra.mxu0 0.0
    %334 = vmatprep.subr.mxu0 0.0
    %335 = vmatpush1.msra.mxu0 0.0
    %336 = vmatprep.subr.mxu0 0.0
    %337 = vmatpush1.msra.mxu0 0.0
    %338 = vmatprep.subr.mxu0 0.0
    %339 = vmatpush1.msra.mxu0 0.0
    %340 = vmatprep.subr.mxu0 0.0
    %341 = vmatpush1.msra.mxu0 0.0
    %342 = vmatprep.subr.mxu0 0.0
    %343 = vmatpush1.msra.mxu0 0.0
    %344 = vmatprep.subr.mxu0 0.0
    %345 = vmatpush1.msra.mxu0 0.0
    %346 = vmatprep.subr.mxu0 0.0
    %347 = vmatpush1.msra.mxu0 0.0
    %348 = vmatprep.subr.mxu0 0.0
    %349 = vmatpush1.msra.mxu0 0.0
    %350 = vmatprep.subr.mxu0 0.0
    %351 = vmatpush1.msra.mxu0 0.0
    %352 = vmatprep.subr.mxu0 0.0
    %353 = vmatpush1.msra.mxu0 0.0
    %354 = vmatprep.subr.mxu0 0.0
    %355 = vmatpush1.msra.mxu0 0.0
    %356 = vmatprep.subr.mxu0 0.0
    %357 = vmatpush1.msra.mxu0 0.0
    %358 = vmatprep.subr.mxu0 0.0
    %359 = vmatpush1.msra.mxu0 0.0
    %360 = vmatprep.subr.mxu0 0.0
    %361 = vmatpush1.msra.mxu0 0.0
    %362 = vmatprep.mubr.f32.mxu0 0.0
    %v363 = vand.u32 %v58, 4294901760
    %v364 = vsub.f32 %v58, %v363
    %365 = vmatmul.mubr.f32.gmra.mrb[0].mxu0 %v364
    %v366 = vpop.f32.mrb[0].mxu0
    %v367 = vadd.f32 %v267, %v366
    %v368 = vpop.f32.mrb[0].mxu0
    %369 = vmatprep.mubr.f32.mxu0 0.0
    %v370 = vand.u32 %v61, 4294901760
    %v371 = vsub.f32 %v61, %v370
    %372 = vmatmul.mubr.f32.gmra.mrb[0].mxu0 %v371
    %v373 = vpop.f32.mrb[0].mxu0
    %v374 = vadd.f32 %v273, %v373
    %v375 = vpop.f32.mrb[0].mxu0
    %376 = vmatprep.mubr.f32.mxu0 0.0
    %v377 = vand.u32 %v64, 4294901760
    %v378 = vsub.f32 %v64, %v377
    %379 = vmatmul.mubr.f32.gmra.mrb[0].mxu0 %v378
    %v380 = vpop.f32.mrb[0].mxu0
    %v381 = vadd.f32 %v279, %v380
    %v382 = vpop.f32.mrb[0].mxu0
    %383 = vmatprep.mubr.f32.mxu0 0.0
    %v384 = vand.u32 %v67, 4294901760
    %v385 = vsub.f32 %v67, %v384
    %386 = vmatmul.mubr.f32.gmra.mrb[0].mxu0 %v385
    %v387 = vpop.f32.mrb[0].mxu0
    %v388 = vadd.f32 %v285, %v387
    %v389 = vpop.f32.mrb[0].mxu0
    %390 = vmatprep.mubr.f32.mxu0 0.0
    %v391 = vand.u32 %v70, 4294901760
    %v392 = vsub.f32 %v70, %v391
    %393 = vmatmul.mubr.f32.gmra.mrb[0].mxu0 %v392
    %v394 = vpop.f32.mrb[0].mxu0
    %v395 = vadd.f32 %v291, %v394
    %v396 = vpop.f32.mrb[0].mxu0
    %397 = vdwg.mxu0
    %398 = vmatprep.subr.mxu0 0.0
    %v399 = vand.u32 %v27, 4294901760
    %400 = vmatpush1.msra.mxu0 %v399
    %401 = vmatprep.subr.mxu0 0.0
    %v402 = vand.u32 %v28, 4294901760
    %403 = vmatpush1.msra.mxu0 %v402
    %404 = vmatprep.subr.mxu0 0.0
    %405 = vmatpush1.msra.mxu0 0.0
    %406 = vmatprep.subr.mxu0 0.0
    %407 = vmatpush1.msra.mxu0 0.0
    %408 = vmatprep.subr.mxu0 0.0
    %409 = vmatpush1.msra.mxu0 0.0
    %410 = vmatprep.subr.mxu0 0.0
    %411 = vmatpush1.msra.mxu0 0.0
    %412 = vmatprep.subr.mxu0 0.0
    %413 = vmatpush1.msra.mxu0 0.0
    %414 = vmatprep.subr.mxu0 0.0
    %415 = vmatpush1.msra.mxu0 0.0
    %416 = vmatprep.subr.mxu0 0.0
    %417 = vmatpush1.msra.mxu0 0.0
    %418 = vmatprep.subr.mxu0 0.0
    %419 = vmatpush1.msra.mxu0 0.0
    %420 = vmatprep.subr.mxu0 0.0
    %421 = vmatpush1.msra.mxu0 0.0
    %422 = vmatprep.subr.mxu0 0.0
    %423 = vmatpush1.msra.mxu0 0.0
    %424 = vmatprep.subr.mxu0 0.0
    %425 = vmatpush1.msra.mxu0 0.0
    %426 = vmatprep.subr.mxu0 0.0
    %427 = vmatpush1.msra.mxu0 0.0
    %428 = vmatprep.subr.mxu0 0.0
    %429 = vmatpush1.msra.mxu0 0.0
    %430 = vmatprep.subr.mxu0 0.0
    %431 = vmatpush1.msra.mxu0 0.0
    %432 = vmatprep.subr.mxu0 0.0
    %433 = vmatpush1.msra.mxu0 0.0
    %434 = vmatprep.subr.mxu0 0.0
    %435 = vmatpush1.msra.mxu0 0.0
    %436 = vmatprep.subr.mxu0 0.0
    %437 = vmatpush1.msra.mxu0 0.0
    %438 = vmatprep.subr.mxu0 0.0
    %439 = vmatpush1.msra.mxu0 0.0
    %440 = vmatprep.subr.mxu0 0.0
    %441 = vmatpush1.msra.mxu0 0.0
    %442 = vmatprep.subr.mxu0 0.0
    %443 = vmatpush1.msra.mxu0 0.0
    %444 = vmatprep.subr.mxu0 0.0
    %445 = vmatpush1.msra.mxu0 0.0
    %446 = vmatprep.subr.mxu0 0.0
    %447 = vmatpush1.msra.mxu0 0.0
    %448 = vmatprep.subr.mxu0 0.0
    %449 = vmatpush1.msra.mxu0 0.0
    %450 = vmatprep.subr.mxu0 0.0
    %451 = vmatpush1.msra.mxu0 0.0
    %452 = vmatprep.subr.mxu0 0.0
    %453 = vmatpush1.msra.mxu0 0.0
    %454 = vmatprep.subr.mxu0 0.0
    %455 = vmatpush1.msra.mxu0 0.0
    %456 = vmatprep.subr.mxu0 0.0
    %457 = vmatpush1.msra.mxu0 0.0
    %458 = vmatprep.subr.mxu0 0.0
    %459 = vmatpush1.msra.mxu0 0.0
    %460 = vmatprep.subr.mxu0 0.0
    %461 = vmatpush1.msra.mxu0 0.0
    %462 = vmatprep.subr.mxu0 0.0
    %463 = vmatpush1.msra.mxu0 0.0
    %464 = vmatprep.mubr.f32.mxu0 0.0
    %v465 = vand.u32 %v58, 4294901760
    %v466 = vsub.f32 %v58, %v465
    %v467 = vand.u32 %v466, 4294901760
    %468 = vmatmul.mubr.f32.gmra.mrb[0].mxu0 %v467
    %v469 = vpop.f32.mrb[0].mxu0
    %v470 = vadd.f32 %v367, %v469
    %v471 = vpop.f32.mrb[0].mxu0
    %472 = vmatprep.mubr.f32.mxu0 0.0
    %v473 = vand.u32 %v61, 4294901760
    %v474 = vsub.f32 %v61, %v473
    %v475 = vand.u32 %v474, 4294901760
    %476 = vmatmul.mubr.f32.gmra.mrb[0].mxu0 %v475
    %v477 = vpop.f32.mrb[0].mxu0
    %v478 = vadd.f32 %v374, %v477
    %v479 = vpop.f32.mrb[0].mxu0
    %480 = vmatprep.mubr.f32.mxu0 0.0
    %v481 = vand.u32 %v64, 4294901760
    %v482 = vsub.f32 %v64, %v481
    %v483 = vand.u32 %v482, 4294901760
    %484 = vmatmul.mubr.f32.gmra.mrb[0].mxu0 %v483
    %v485 = vpop.f32.mrb[0].mxu0
    %v486 = vadd.f32 %v381, %v485
    %v487 = vpop.f32.mrb[0].mxu0
    %488 = vmatprep.mubr.f32.mxu0 0.0
    %v489 = vand.u32 %v67, 4294901760
    %v490 = vsub.f32 %v67, %v489
    %v491 = vand.u32 %v490, 4294901760
    %492 = vmatmul.mubr.f32.gmra.mrb[0].mxu0 %v491
    %v493 = vpop.f32.mrb[0].mxu0
    %v494 = vadd.f32 %v388, %v493
    %v495 = vpop.f32.mrb[0].mxu0
    %496 = vmatprep.mubr.f32.mxu0 0.0
    %v497 = vand.u32 %v70, 4294901760
    %v498 = vsub.f32 %v70, %v497
    %v499 = vand.u32 %v498, 4294901760
    %500 = vmatmul.mubr.f32.gmra.mrb[0].mxu0 %v499
    %v501 = vpop.f32.mrb[0].mxu0
    %v502 = vadd.f32 %v395, %v501
    %v503 = vpop.f32.mrb[0].mxu0
    %504 = vdwg.mxu0
    %505 = vmatprep.subr.mxu0 0.0
    %v506 = vand.u32 %v27, 4294901760
    %v507 = vsub.f32 %v27, %v506
    %v508 = vand.u32 %v507, 4294901760
    %509 = vmatpush1.msra.mxu0 %v508
    %510 = vmatprep.subr.mxu0 0.0
    %v511 = vand.u32 %v28, 4294901760
    %v512 = vsub.f32 %v28, %v511
    %v513 = vand.u32 %v512, 4294901760
    %514 = vmatpush1.msra.mxu0 %v513
    %515 = vmatprep.subr.mxu0 0.0
    %516 = vmatpush1.msra.mxu0 0.0
    %517 = vmatprep.subr.mxu0 0.0
    %518 = vmatpush1.msra.mxu0 0.0
    %519 = vmatprep.subr.mxu0 0.0
    %520 = vmatpush1.msra.mxu0 0.0
    %521 = vmatprep.subr.mxu0 0.0
    %522 = vmatpush1.msra.mxu0 0.0
    %523 = vmatprep.subr.mxu0 0.0
    %524 = vmatpush1.msra.mxu0 0.0
    %525 = vmatprep.subr.mxu0 0.0
    %526 = vmatpush1.msra.mxu0 0.0
    %527 = vmatprep.subr.mxu0 0.0
    %528 = vmatpush1.msra.mxu0 0.0
    %529 = vmatprep.subr.mxu0 0.0
    %530 = vmatpush1.msra.mxu0 0.0
    %531 = vmatprep.subr.mxu0 0.0
    %532 = vmatpush1.msra.mxu0 0.0
    %533 = vmatprep.subr.mxu0 0.0
    %534 = vmatpush1.msra.mxu0 0.0
    %535 = vmatprep.subr.mxu0 0.0
    %536 = vmatpush1.msra.mxu0 0.0
    %537 = vmatprep.subr.mxu0 0.0
    %538 = vmatpush1.msra.mxu0 0.0
    %539 = vmatprep.subr.mxu0 0.0
    %540 = vmatpush1.msra.mxu0 0.0
    %541 = vmatprep.subr.mxu0 0.0
    %542 = vmatpush1.msra.mxu0 0.0
    %543 = vmatprep.subr.mxu0 0.0
    %544 = vmatpush1.msra.mxu0 0.0
    %545 = vmatprep.subr.mxu0 0.0
    %546 = vmatpush1.msra.mxu0 0.0
    %547 = vmatprep.subr.mxu0 0.0
    %548 = vmatpush1.msra.mxu0 0.0
    %549 = vmatprep.subr.mxu0 0.0
    %550 = vmatpush1.msra.mxu0 0.0
    %551 = vmatprep.subr.mxu0 0.0
    %552 = vmatpush1.msra.mxu0 0.0
    %553 = vmatprep.subr.mxu0 0.0
    %554 = vmatpush1.msra.mxu0 0.0
    %555 = vmatprep.subr.mxu0 0.0
    %556 = vmatpush1.msra.mxu0 0.0
    %557 = vmatprep.subr.mxu0 0.0
    %558 = vmatpush1.msra.mxu0 0.0
    %559 = vmatprep.subr.mxu0 0.0
    %560 = vmatpush1.msra.mxu0 0.0
    %561 = vmatprep.subr.mxu0 0.0
    %562 = vmatpush1.msra.mxu0 0.0
    %563 = vmatprep.subr.mxu0 0.0
    %564 = vmatpush1.msra.mxu0 0.0
    %565 = vmatprep.subr.mxu0 0.0
    %566 = vmatpush1.msra.mxu0 0.0
    %567 = vmatprep.subr.mxu0 0.0
    %568 = vmatpush1.msra.mxu0 0.0
    %569 = vmatprep.subr.mxu0 0.0
    %570 = vmatpush1.msra.mxu0 0.0
    %571 = vmatprep.subr.mxu0 0.0
    %572 = vmatpush1.msra.mxu0 0.0
    %573 = vmatprep.subr.mxu0 0.0
    %574 = vmatpush1.msra.mxu0 0.0
    %575 = vmatprep.mubr.f32.mxu0 0.0
    %v576 = vand.u32 %v58, 4294901760
    %577 = vmatmul.mubr.f32.gmra.mrb[0].mxu0 %v576
    %v578 = vpop.f32.mrb[0].mxu0
    %v579 = vadd.f32 %v470, %v578
    %v580 = vpop.f32.mrb[0].mxu0
    %581 = vmatprep.mubr.f32.mxu0 0.0
    %v582 = vand.u32 %v61, 4294901760
    %583 = vmatmul.mubr.f32.gmra.mrb[0].mxu0 %v582
    %v584 = vpop.f32.mrb[0].mxu0
    %v585 = vadd.f32 %v478, %v584
    %v586 = vpop.f32.mrb[0].mxu0
    %587 = vmatprep.mubr.f32.mxu0 0.0
    %v588 = vand.u32 %v64, 4294901760
    %589 = vmatmul.mubr.f32.gmra.mrb[0].mxu0 %v588
    %v590 = vpop.f32.mrb[0].mxu0
    %v591 = vadd.f32 %v486, %v590
    %v592 = vpop.f32.mrb[0].mxu0
    %593 = vmatprep.mubr.f32.mxu0 0.0
    %v594 = vand.u32 %v67, 4294901760
    %595 = vmatmul.mubr.f32.gmra.mrb[0].mxu0 %v594
    %v596 = vpop.f32.mrb[0].mxu0
    %v597 = vadd.f32 %v494, %v596
    %v598 = vpop.f32.mrb[0].mxu0
    %599 = vmatprep.mubr.f32.mxu0 0.0
    %v600 = vand.u32 %v70, 4294901760
    %601 = vmatmul.mubr.f32.gmra.mrb[0].mxu0 %v600
    %v602 = vpop.f32.mrb[0].mxu0
    %v603 = vadd.f32 %v502, %v602
    %v604 = vpop.f32.mrb[0].mxu0
    %605 = vdwg.mxu0
    %606 = vmatprep.subr.mxu0 0.0
    %v607 = vand.u32 %v27, 4294901760
    %608 = vmatpush1.msra.mxu0 %v607
    %609 = vmatprep.subr.mxu0 0.0
    %v610 = vand.u32 %v28, 4294901760
    %611 = vmatpush1.msra.mxu0 %v610
    %612 = vmatprep.subr.mxu0 0.0
    %613 = vmatpush1.msra.mxu0 0.0
    %614 = vmatprep.subr.mxu0 0.0
    %615 = vmatpush1.msra.mxu0 0.0
    %616 = vmatprep.subr.mxu0 0.0
    %617 = vmatpush1.msra.mxu0 0.0
    %618 = vmatprep.subr.mxu0 0.0
    %619 = vmatpush1.msra.mxu0 0.0
    %620 = vmatprep.subr.mxu0 0.0
    %621 = vmatpush1.msra.mxu0 0.0
    %622 = vmatprep.subr.mxu0 0.0
    %623 = vmatpush1.msra.mxu0 0.0
    %624 = vmatprep.subr.mxu0 0.0
    %625 = vmatpush1.msra.mxu0 0.0
    %626 = vmatprep.subr.mxu0 0.0
    %627 = vmatpush1.msra.mxu0 0.0
    %628 = vmatprep.subr.mxu0 0.0
    %629 = vmatpush1.msra.mxu0 0.0
    %630 = vmatprep.subr.mxu0 0.0
    %631 = vmatpush1.msra.mxu0 0.0
    %632 = vmatprep.subr.mxu0 0.0
    %633 = vmatpush1.msra.mxu0 0.0
    %634 = vmatprep.subr.mxu0 0.0
    %635 = vmatpush1.msra.mxu0 0.0
    %636 = vmatprep.subr.mxu0 0.0
    %637 = vmatpush1.msra.mxu0 0.0
    %638 = vmatprep.subr.mxu0 0.0
    %639 = vmatpush1.msra.mxu0 0.0
    %640 = vmatprep.subr.mxu0 0.0
    %641 = vmatpush1.msra.mxu0 0.0
    %642 = vmatprep.subr.mxu0 0.0
    %643 = vmatpush1.msra.mxu0 0.0
    %644 = vmatprep.subr.mxu0 0.0
    %645 = vmatpush1.msra.mxu0 0.0
    %646 = vmatprep.subr.mxu0 0.0
    %647 = vmatpush1.msra.mxu0 0.0
    %648 = vmatprep.subr.mxu0 0.0
    %649 = vmatpush1.msra.mxu0 0.0
    %650 = vmatprep.subr.mxu0 0.0
    %651 = vmatpush1.msra.mxu0 0.0
    %652 = vmatprep.subr.mxu0 0.0
    %653 = vmatpush1.msra.mxu0 0.0
    %654 = vmatprep.subr.mxu0 0.0
    %655 = vmatpush1.msra.mxu0 0.0
    %656 = vmatprep.subr.mxu0 0.0
    %657 = vmatpush1.msra.mxu0 0.0
    %658 = vmatprep.subr.mxu0 0.0
    %659 = vmatpush1.msra.mxu0 0.0
    %660 = vmatprep.subr.mxu0 0.0
    %661 = vmatpush1.msra.mxu0 0.0
    %662 = vmatprep.subr.mxu0 0.0
    %663 = vmatpush1.msra.mxu0 0.0
    %664 = vmatprep.subr.mxu0 0.0
    %665 = vmatpush1.msra.mxu0 0.0
    %666 = vmatprep.subr.mxu0 0.0
    %667 = vmatpush1.msra.mxu0 0.0
    %668 = vmatprep.subr.mxu0 0.0
    %669 = vmatpush1.msra.mxu0 0.0
    %670 = vmatprep.subr.mxu0 0.0
    %671 = vmatpush1.msra.mxu0 0.0
    %672 = vmatprep.mubr.f32.mxu0 0.0
    %v673 = vand.u32 %v58, 4294901760
    %674 = vmatmul.mubr.f32.gmra.mrb[0].mxu0 %v673
    %v675 = vpop.f32.mrb[0].mxu0
    %v676 = vadd.f32 %v579, %v675
    %v677 = vpop.f32.mrb[0].mxu0
    %678 = vmatprep.mubr.f32.mxu0 0.0
    %v679 = vand.u32 %v61, 4294901760
    %680 = vmatmul.mubr.f32.gmra.mrb[0].mxu0 %v679
    %v681 = vpop.f32.mrb[0].mxu0
    %v682 = vadd.f32 %v585, %v681
    %v683 = vpop.f32.mrb[0].mxu0
    %684 = vmatprep.mubr.f32.mxu0 0.0
    %v685 = vand.u32 %v64, 4294901760
    %686 = vmatmul.mubr.f32.gmra.mrb[0].mxu0 %v685
    %v687 = vpop.f32.mrb[0].mxu0
    %v688 = vadd.f32 %v591, %v687
    %v689 = vpop.f32.mrb[0].mxu0
    %690 = vmatprep.mubr.f32.mxu0 0.0
    %v691 = vand.u32 %v67, 4294901760
    %692 = vmatmul.mubr.f32.gmra.mrb[0].mxu0 %v691
    %v693 = vpop.f32.mrb[0].mxu0
    %v694 = vadd.f32 %v597, %v693
    %v695 = vpop.f32.mrb[0].mxu0
    %696 = vmatprep.mubr.f32.mxu0 0.0
    %v697 = vand.u32 %v70, 4294901760
    %698 = vmatmul.mubr.f32.gmra.mrb[0].mxu0 %v697
    %v699 = vpop.f32.mrb[0].mxu0
    %v700 = vadd.f32 %v603, %v699
    %v701 = vpop.f32.mrb[0].mxu0
    %702 = vdwg.mxu0
    %v703 = vld [vmem:[%s2] sm:$0xff]
    %v704 = vld [vmem:[%s2 + $0x8] sm:$0xff]
    %v705 = vld [vmem:[%s2 + $0x10] sm:$0xff]
    %v706 = vld [vmem:[%s2 + $0x18] sm:$0xff]
    %v707 = vld [vmem:[%s2 + $0x20] sm:$0x1]
    %v709 = vsel %vm56, %v703, 0
    %v712 = vsel %vm56, %v704, 0
    %v715 = vsel %vm56, %v705, 0
    %v718 = vsel %vm56, %v706, 0
    %v721 = vsel %vm56, %v707, 0
    %723 = vmatprep.subr.mxu0 0.0
    %v724 = vand.u32 %v49, 4294901760
    %725 = vmatpush1.msra.mxu0 %v724
    %726 = vmatprep.subr.mxu0 0.0
    %v727 = vand.u32 %v50, 4294901760
    %728 = vmatpush1.msra.mxu0 %v727
    %729 = vmatprep.subr.mxu0 0.0
    %730 = vmatpush1.msra.mxu0 0.0
    %731 = vmatprep.subr.mxu0 0.0
    %732 = vmatpush1.msra.mxu0 0.0
    %733 = vmatprep.subr.mxu0 0.0
    %734 = vmatpush1.msra.mxu0 0.0
    %735 = vmatprep.subr.mxu0 0.0
    %736 = vmatpush1.msra.mxu0 0.0
    %737 = vmatprep.subr.mxu0 0.0
    %738 = vmatpush1.msra.mxu0 0.0
    %739 = vmatprep.subr.mxu0 0.0
    %740 = vmatpush1.msra.mxu0 0.0
    %741 = vmatprep.subr.mxu0 0.0
    %742 = vmatpush1.msra.mxu0 0.0
    %743 = vmatprep.subr.mxu0 0.0
    %744 = vmatpush1.msra.mxu0 0.0
    %745 = vmatprep.subr.mxu0 0.0
    %746 = vmatpush1.msra.mxu0 0.0
    %747 = vmatprep.subr.mxu0 0.0
    %748 = vmatpush1.msra.mxu0 0.0
    %749 = vmatprep.subr.mxu0 0.0
    %750 = vmatpush1.msra.mxu0 0.0
    %751 = vmatprep.subr.mxu0 0.0
    %752 = vmatpush1.msra.mxu0 0.0
    %753 = vmatprep.subr.mxu0 0.0
    %754 = vmatpush1.msra.mxu0 0.0
    %755 = vmatprep.subr.mxu0 0.0
    %756 = vmatpush1.msra.mxu0 0.0
    %757 = vmatprep.subr.mxu0 0.0
    %758 = vmatpush1.msra.mxu0 0.0
    %759 = vmatprep.subr.mxu0 0.0
    %760 = vmatpush1.msra.mxu0 0.0
    %761 = vmatprep.subr.mxu0 0.0
    %762 = vmatpush1.msra.mxu0 0.0
    %763 = vmatprep.subr.mxu0 0.0
    %764 = vmatpush1.msra.mxu0 0.0
    %765 = vmatprep.subr.mxu0 0.0
    %766 = vmatpush1.msra.mxu0 0.0
    %767 = vmatprep.subr.mxu0 0.0
    %768 = vmatpush1.msra.mxu0 0.0
    %769 = vmatprep.subr.mxu0 0.0
    %770 = vmatpush1.msra.mxu0 0.0
    %771 = vmatprep.subr.mxu0 0.0
    %772 = vmatpush1.msra.mxu0 0.0
    %773 = vmatprep.subr.mxu0 0.0
    %774 = vmatpush1.msra.mxu0 0.0
    %775 = vmatprep.subr.mxu0 0.0
    %776 = vmatpush1.msra.mxu0 0.0
    %777 = vmatprep.subr.mxu0 0.0
    %778 = vmatpush1.msra.mxu0 0.0
    %779 = vmatprep.subr.mxu0 0.0
    %780 = vmatpush1.msra.mxu0 0.0
    %781 = vmatprep.subr.mxu0 0.0
    %782 = vmatpush1.msra.mxu0 0.0
    %783 = vmatprep.subr.mxu0 0.0
    %784 = vmatpush1.msra.mxu0 0.0
    %785 = vmatprep.subr.mxu0 0.0
    %786 = vmatpush1.msra.mxu0 0.0
    %787 = vmatprep.subr.mxu0 0.0
    %788 = vmatpush1.msra.mxu0 0.0
    %789 = vmatprep.mubr.f32.mxu0 0.0
    %v790 = vand.u32 %v709, 4294901760
    %v791 = vsub.f32 %v709, %v790
    %v792 = vand.u32 %v791, 4294901760
    %v793 = vsub.f32 %v791, %v792
    %v794 = vand.u32 %v793, 4294901760
    %795 = vmatmul.mubr.f32.gmra.mrb[0].mxu0 %v794
    %v796 = vpop.f32.mrb[0].mxu0
    %v797 = vadd.f32 0.0, %v796
    %v798 = vpop.f32.mrb[0].mxu0
    %799 = vmatprep.mubr.f32.mxu0 0.0
    %v800 = vand.u32 %v712, 4294901760
    %v801 = vsub.f32 %v712, %v800
    %v802 = vand.u32 %v801, 4294901760
    %v803 = vsub.f32 %v801, %v802
    %v804 = vand.u32 %v803, 4294901760
    %805 = vmatmul.mubr.f32.gmra.mrb[0].mxu0 %v804
    %v806 = vpop.f32.mrb[0].mxu0
    %v807 = vadd.f32 0.0, %v806
    %v808 = vpop.f32.mrb[0].mxu0
    %809 = vmatprep.mubr.f32.mxu0 0.0
    %v810 = vand.u32 %v715, 4294901760
    %v811 = vsub.f32 %v715, %v810
    %v812 = vand.u32 %v811, 4294901760
    %v813 = vsub.f32 %v811, %v812
    %v814 = vand.u32 %v813, 4294901760
    %815 = vmatmul.mubr.f32.gmra.mrb[0].mxu0 %v814
    %v816 = vpop.f32.mrb[0].mxu0
    %v817 = vadd.f32 0.0, %v816
    %v818 = vpop.f32.mrb[0].mxu0
    %819 = vmatprep.mubr.f32.mxu0 0.0
    %v820 = vand.u32 %v718, 4294901760
    %v821 = vsub.f32 %v718, %v820
    %v822 = vand.u32 %v821, 4294901760
    %v823 = vsub.f32 %v821, %v822
    %v824 = vand.u32 %v823, 4294901760
    %825 = vmatmul.mubr.f32.gmra.mrb[0].mxu0 %v824
    %v826 = vpop.f32.mrb[0].mxu0
    %v827 = vadd.f32 0.0, %v826
    %v828 = vpop.f32.mrb[0].mxu0
    %829 = vmatprep.mubr.f32.mxu0 0.0
    %v830 = vand.u32 %v721, 4294901760
    %v831 = vsub.f32 %v721, %v830
    %v832 = vand.u32 %v831, 4294901760
    %v833 = vsub.f32 %v831, %v832
    %v834 = vand.u32 %v833, 4294901760
    %835 = vmatmul.mubr.f32.gmra.mrb[0].mxu0 %v834
    %v836 = vpop.f32.mrb[0].mxu0
    %v837 = vadd.f32 0.0, %v836
    %v838 = vpop.f32.mrb[0].mxu0
    %839 = vdwg.mxu0
    %840 = vmatprep.subr.mxu0 0.0
    %v841 = vand.u32 %v49, 4294901760
    %v842 = vsub.f32 %v49, %v841
    %v843 = vand.u32 %v842, 4294901760
    %v844 = vsub.f32 %v842, %v843
    %v845 = vand.u32 %v844, 4294901760
    %846 = vmatpush1.msra.mxu0 %v845
    %847 = vmatprep.subr.mxu0 0.0
    %v848 = vand.u32 %v50, 4294901760
    %v849 = vsub.f32 %v50, %v848
    %v850 = vand.u32 %v849, 4294901760
    %v851 = vsub.f32 %v849, %v850
    %v852 = vand.u32 %v851, 4294901760
    %853 = vmatpush1.msra.mxu0 %v852
    %854 = vmatprep.subr.mxu0 0.0
    %855 = vmatpush1.msra.mxu0 0.0
    %856 = vmatprep.subr.mxu0 0.0
    %857 = vmatpush1.msra.mxu0 0.0
    %858 = vmatprep.subr.mxu0 0.0
    %859 = vmatpush1.msra.mxu0 0.0
    %860 = vmatprep.subr.mxu0 0.0
    %861 = vmatpush1.msra.mxu0 0.0
    %862 = vmatprep.subr.mxu0 0.0
    %863 = vmatpush1.msra.mxu0 0.0
    %864 = vmatprep.subr.mxu0 0.0
    %865 = vmatpush1.msra.mxu0 0.0
    %866 = vmatprep.subr.mxu0 0.0
    %867 = vmatpush1.msra.mxu0 0.0
    %868 = vmatprep.subr.mxu0 0.0
    %869 = vmatpush1.msra.mxu0 0.0
    %870 = vmatprep.subr.mxu0 0.0
    %871 = vmatpush1.msra.mxu0 0.0
    %872 = vmatprep.subr.mxu0 0.0
    %873 = vmatpush1.msra.mxu0 0.0
    %874 = vmatprep.subr.mxu0 0.0
    %875 = vmatpush1.msra.mxu0 0.0
    %876 = vmatprep.subr.mxu0 0.0
    %877 = vmatpush1.msra.mxu0 0.0
    %878 = vmatprep.subr.mxu0 0.0
    %879 = vmatpush1.msra.mxu0 0.0
    %880 = vmatprep.subr.mxu0 0.0
    %881 = vmatpush1.msra.mxu0 0.0
    %882 = vmatprep.subr.mxu0 0.0
    %883 = vmatpush1.msra.mxu0 0.0
    %884 = vmatprep.subr.mxu0 0.0
    %885 = vmatpush1.msra.mxu0 0.0
    %886 = vmatprep.subr.mxu0 0.0
    %887 = vmatpush1.msra.mxu0 0.0
    %888 = vmatprep.subr.mxu0 0.0
    %889 = vmatpush1.msra.mxu0 0.0
    %890 = vmatprep.subr.mxu0 0.0
    %891 = vmatpush1.msra.mxu0 0.0
    %892 = vmatprep.subr.mxu0 0.0
    %893 = vmatpush1.msra.mxu0 0.0
    %894 = vmatprep.subr.mxu0 0.0
    %895 = vmatpush1.msra.mxu0 0.0
    %896 = vmatprep.subr.mxu0 0.0
    %897 = vmatpush1.msra.mxu0 0.0
    %898 = vmatprep.subr.mxu0 0.0
    %899 = vmatpush1.msra.mxu0 0.0
    %900 = vmatprep.subr.mxu0 0.0
    %901 = vmatpush1.msra.mxu0 0.0
    %902 = vmatprep.subr.mxu0 0.0
    %903 = vmatpush1.msra.mxu0 0.0
    %904 = vmatprep.subr.mxu0 0.0
    %905 = vmatpush1.msra.mxu0 0.0
    %906 = vmatprep.subr.mxu0 0.0
    %907 = vmatpush1.msra.mxu0 0.0
    %908 = vmatprep.subr.mxu0 0.0
    %909 = vmatpush1.msra.mxu0 0.0
    %910 = vmatprep.subr.mxu0 0.0
    %911 = vmatpush1.msra.mxu0 0.0
    %912 = vmatprep.subr.mxu0 0.0
    %913 = vmatpush1.msra.mxu0 0.0
    %914 = vmatprep.mubr.f32.mxu0 0.0
    %v915 = vand.u32 %v709, 4294901760
    %916 = vmatmul.mubr.f32.gmra.mrb[0].mxu0 %v915
    %v917 = vpop.f32.mrb[0].mxu0
    %v918 = vadd.f32 %v797, %v917
    %v919 = vpop.f32.mrb[0].mxu0
    %920 = vmatprep.mubr.f32.mxu0 0.0
    %v921 = vand.u32 %v712, 4294901760
    %922 = vmatmul.mubr.f32.gmra.mrb[0].mxu0 %v921
    %v923 = vpop.f32.mrb[0].mxu0
    %v924 = vadd.f32 %v807, %v923
    %v925 = vpop.f32.mrb[0].mxu0
    %926 = vmatprep.mubr.f32.mxu0 0.0
    %v927 = vand.u32 %v715, 4294901760
    %928 = vmatmul.mubr.f32.gmra.mrb[0].mxu0 %v927
    %v929 = vpop.f32.mrb[0].mxu0
    %v930 = vadd.f32 %v817, %v929
    %v931 = vpop.f32.mrb[0].mxu0
    %932 = vmatprep.mubr.f32.mxu0 0.0
    %v933 = vand.u32 %v718, 4294901760
    %934 = vmatmul.mubr.f32.gmra.mrb[0].mxu0 %v933
    %v935 = vpop.f32.mrb[0].mxu0
    %v936 = vadd.f32 %v827, %v935
    %v937 = vpop.f32.mrb[0].mxu0
    %938 = vmatprep.mubr.f32.mxu0 0.0
    %v939 = vand.u32 %v721, 4294901760
    %940 = vmatmul.mubr.f32.gmra.mrb[0].mxu0 %v939
    %v941 = vpop.f32.mrb[0].mxu0
    %v942 = vadd.f32 %v837, %v941
    %v943 = vpop.f32.mrb[0].mxu0
    %944 = vdwg.mxu0
    %945 = vmatprep.subr.mxu0 0.0
    %v946 = vand.u32 %v49, 4294901760
    %v947 = vsub.f32 %v49, %v946
    %948 = vmatpush1.msra.mxu0 %v947
    %949 = vmatprep.subr.mxu0 0.0
    %v950 = vand.u32 %v50, 4294901760
    %v951 = vsub.f32 %v50, %v950
    %952 = vmatpush1.msra.mxu0 %v951
    %953 = vmatprep.subr.mxu0 0.0
    %954 = vmatpush1.msra.mxu0 0.0
    %955 = vmatprep.subr.mxu0 0.0
    %956 = vmatpush1.msra.mxu0 0.0
    %957 = vmatprep.subr.mxu0 0.0
    %958 = vmatpush1.msra.mxu0 0.0
    %959 = vmatprep.subr.mxu0 0.0
    %960 = vmatpush1.msra.mxu0 0.0
    %961 = vmatprep.subr.mxu0 0.0
    %962 = vmatpush1.msra.mxu0 0.0
    %963 = vmatprep.subr.mxu0 0.0
    %964 = vmatpush1.msra.mxu0 0.0
    %965 = vmatprep.subr.mxu0 0.0
    %966 = vmatpush1.msra.mxu0 0.0
    %967 = vmatprep.subr.mxu0 0.0
    %968 = vmatpush1.msra.mxu0 0.0
    %969 = vmatprep.subr.mxu0 0.0
    %970 = vmatpush1.msra.mxu0 0.0
    %971 = vmatprep.subr.mxu0 0.0
    %972 = vmatpush1.msra.mxu0 0.0
    %973 = vmatprep.subr.mxu0 0.0
    %974 = vmatpush1.msra.mxu0 0.0
    %975 = vmatprep.subr.mxu0 0.0
    %976 = vmatpush1.msra.mxu0 0.0
    %977 = vmatprep.subr.mxu0 0.0
    %978 = vmatpush1.msra.mxu0 0.0
    %979 = vmatprep.subr.mxu0 0.0
    %980 = vmatpush1.msra.mxu0 0.0
    %981 = vmatprep.subr.mxu0 0.0
    %982 = vmatpush1.msra.mxu0 0.0
    %983 = vmatprep.subr.mxu0 0.0
    %984 = vmatpush1.msra.mxu0 0.0
    %985 = vmatprep.subr.mxu0 0.0
    %986 = vmatpush1.msra.mxu0 0.0
    %987 = vmatprep.subr.mxu0 0.0
    %988 = vmatpush1.msra.mxu0 0.0
    %989 = vmatprep.subr.mxu0 0.0
    %990 = vmatpush1.msra.mxu0 0.0
    %991 = vmatprep.subr.mxu0 0.0
    %992 = vmatpush1.msra.mxu0 0.0
    %993 = vmatprep.subr.mxu0 0.0
    %994 = vmatpush1.msra.mxu0 0.0
    %995 = vmatprep.subr.mxu0 0.0
    %996 = vmatpush1.msra.mxu0 0.0
    %997 = vmatprep.subr.mxu0 0.0
    %998 = vmatpush1.msra.mxu0 0.0
    %999 = vmatprep.subr.mxu0 0.0
    %1000 = vmatpush1.msra.mxu0 0.0
    %1001 = vmatprep.subr.mxu0 0.0
    %1002 = vmatpush1.msra.mxu0 0.0
    %1003 = vmatprep.subr.mxu0 0.0
    %1004 = vmatpush1.msra.mxu0 0.0
    %1005 = vmatprep.subr.mxu0 0.0
    %1006 = vmatpush1.msra.mxu0 0.0
    %1007 = vmatprep.subr.mxu0 0.0
    %1008 = vmatpush1.msra.mxu0 0.0
    %1009 = vmatprep.subr.mxu0 0.0
    %1010 = vmatpush1.msra.mxu0 0.0
    %1011 = vmatprep.subr.mxu0 0.0
    %1012 = vmatpush1.msra.mxu0 0.0
    %1013 = vmatprep.mubr.f32.mxu0 0.0
    %v1014 = vand.u32 %v709, 4294901760
    %v1015 = vsub.f32 %v709, %v1014
    %1016 = vmatmul.mubr.f32.gmra.mrb[0].mxu0 %v1015
    %v1017 = vpop.f32.mrb[0].mxu0
    %v1018 = vadd.f32 %v918, %v1017
    %v1019 = vpop.f32.mrb[0].mxu0
    %1020 = vmatprep.mubr.f32.mxu0 0.0
    %v1021 = vand.u32 %v712, 4294901760
    %v1022 = vsub.f32 %v712, %v1021
    %1023 = vmatmul.mubr.f32.gmra.mrb[0].mxu0 %v1022
    %v1024 = vpop.f32.mrb[0].mxu0
    %v1025 = vadd.f32 %v924, %v1024
    %v1026 = vpop.f32.mrb[0].mxu0
    %1027 = vmatprep.mubr.f32.mxu0 0.0
    %v1028 = vand.u32 %v715, 4294901760
    %v1029 = vsub.f32 %v715, %v1028
    %1030 = vmatmul.mubr.f32.gmra.mrb[0].mxu0 %v1029
    %v1031 = vpop.f32.mrb[0].mxu0
    %v1032 = vadd.f32 %v930, %v1031
    %v1033 = vpop.f32.mrb[0].mxu0
    %1034 = vmatprep.mubr.f32.mxu0 0.0
    %v1035 = vand.u32 %v718, 4294901760
    %v1036 = vsub.f32 %v718, %v1035
    %1037 = vmatmul.mubr.f32.gmra.mrb[0].mxu0 %v1036
    %v1038 = vpop.f32.mrb[0].mxu0
    %v1039 = vadd.f32 %v936, %v1038
    %v1040 = vpop.f32.mrb[0].mxu0
    %1041 = vmatprep.mubr.f32.mxu0 0.0
    %v1042 = vand.u32 %v721, 4294901760
    %v1043 = vsub.f32 %v721, %v1042
    %1044 = vmatmul.mubr.f32.gmra.mrb[0].mxu0 %v1043
    %v1045 = vpop.f32.mrb[0].mxu0
    %v1046 = vadd.f32 %v942, %v1045
    %v1047 = vpop.f32.mrb[0].mxu0
    %1048 = vdwg.mxu0
    %1049 = vmatprep.subr.mxu0 0.0
    %v1050 = vand.u32 %v49, 4294901760
    %1051 = vmatpush1.msra.mxu0 %v1050
    %1052 = vmatprep.subr.mxu0 0.0
    %v1053 = vand.u32 %v50, 4294901760
    %1054 = vmatpush1.msra.mxu0 %v1053
    %1055 = vmatprep.subr.mxu0 0.0
    %1056 = vmatpush1.msra.mxu0 0.0
    %1057 = vmatprep.subr.mxu0 0.0
    %1058 = vmatpush1.msra.mxu0 0.0
    %1059 = vmatprep.subr.mxu0 0.0
    %1060 = vmatpush1.msra.mxu0 0.0
    %1061 = vmatprep.subr.mxu0 0.0
    %1062 = vmatpush1.msra.mxu0 0.0
    %1063 = vmatprep.subr.mxu0 0.0
    %1064 = vmatpush1.msra.mxu0 0.0
    %1065 = vmatprep.subr.mxu0 0.0
    %1066 = vmatpush1.msra.mxu0 0.0
    %1067 = vmatprep.subr.mxu0 0.0
    %1068 = vmatpush1.msra.mxu0 0.0
    %1069 = vmatprep.subr.mxu0 0.0
    %1070 = vmatpush1.msra.mxu0 0.0
    %1071 = vmatprep.subr.mxu0 0.0
    %1072 = vmatpush1.msra.mxu0 0.0
    %1073 = vmatprep.subr.mxu0 0.0
    %1074 = vmatpush1.msra.mxu0 0.0
    %1075 = vmatprep.subr.mxu0 0.0
    %1076 = vmatpush1.msra.mxu0 0.0
    %1077 = vmatprep.subr.mxu0 0.0
    %1078 = vmatpush1.msra.mxu0 0.0
    %1079 = vmatprep.subr.mxu0 0.0
    %1080 = vmatpush1.msra.mxu0 0.0
    %1081 = vmatprep.subr.mxu0 0.0
    %1082 = vmatpush1.msra.mxu0 0.0
    %1083 = vmatprep.subr.mxu0 0.0
    %1084 = vmatpush1.msra.mxu0 0.0
    %1085 = vmatprep.subr.mxu0 0.0
    %1086 = vmatpush1.msra.mxu0 0.0
    %1087 = vmatprep.subr.mxu0 0.0
    %1088 = vmatpush1.msra.mxu0 0.0
    %1089 = vmatprep.subr.mxu0 0.0
    %1090 = vmatpush1.msra.mxu0 0.0
    %1091 = vmatprep.subr.mxu0 0.0
    %1092 = vmatpush1.msra.mxu0 0.0
    %1093 = vmatprep.subr.mxu0 0.0
    %1094 = vmatpush1.msra.mxu0 0.0
    %1095 = vmatprep.subr.mxu0 0.0
    %1096 = vmatpush1.msra.mxu0 0.0
    %1097 = vmatprep.subr.mxu0 0.0
    %1098 = vmatpush1.msra.mxu0 0.0
    %1099 = vmatprep.subr.mxu0 0.0
    %1100 = vmatpush1.msra.mxu0 0.0
    %1101 = vmatprep.subr.mxu0 0.0
    %1102 = vmatpush1.msra.mxu0 0.0
    %1103 = vmatprep.subr.mxu0 0.0
    %1104 = vmatpush1.msra.mxu0 0.0
    %1105 = vmatprep.subr.mxu0 0.0
    %1106 = vmatpush1.msra.mxu0 0.0
    %1107 = vmatprep.subr.mxu0 0.0
    %1108 = vmatpush1.msra.mxu0 0.0
    %1109 = vmatprep.subr.mxu0 0.0
    %1110 = vmatpush1.msra.mxu0 0.0
    %1111 = vmatprep.subr.mxu0 0.0
    %1112 = vmatpush1.msra.mxu0 0.0
    %1113 = vmatprep.subr.mxu0 0.0
    %1114 = vmatpush1.msra.mxu0 0.0
    %1115 = vmatprep.mubr.f32.mxu0 0.0
    %v1116 = vand.u32 %v709, 4294901760
    %v1117 = vsub.f32 %v709, %v1116
    %v1118 = vand.u32 %v1117, 4294901760
    %1119 = vmatmul.mubr.f32.gmra.mrb[0].mxu0 %v1118
    %v1120 = vpop.f32.mrb[0].mxu0
    %v1121 = vadd.f32 %v1018, %v1120
    %v1122 = vpop.f32.mrb[0].mxu0
    %1123 = vmatprep.mubr.f32.mxu0 0.0
    %v1124 = vand.u32 %v712, 4294901760
    %v1125 = vsub.f32 %v712, %v1124
    %v1126 = vand.u32 %v1125, 4294901760
    %1127 = vmatmul.mubr.f32.gmra.mrb[0].mxu0 %v1126
    %v1128 = vpop.f32.mrb[0].mxu0
    %v1129 = vadd.f32 %v1025, %v1128
    %v1130 = vpop.f32.mrb[0].mxu0
    %1131 = vmatprep.mubr.f32.mxu0 0.0
    %v1132 = vand.u32 %v715, 4294901760
    %v1133 = vsub.f32 %v715, %v1132
    %v1134 = vand.u32 %v1133, 4294901760
    %1135 = vmatmul.mubr.f32.gmra.mrb[0].mxu0 %v1134
    %v1136 = vpop.f32.mrb[0].mxu0
    %v1137 = vadd.f32 %v1032, %v1136
    %v1138 = vpop.f32.mrb[0].mxu0
    %1139 = vmatprep.mubr.f32.mxu0 0.0
    %v1140 = vand.u32 %v718, 4294901760
    %v1141 = vsub.f32 %v718, %v1140
    %v1142 = vand.u32 %v1141, 4294901760
    %1143 = vmatmul.mubr.f32.gmra.mrb[0].mxu0 %v1142
    %v1144 = vpop.f32.mrb[0].mxu0
    %v1145 = vadd.f32 %v1039, %v1144
    %v1146 = vpop.f32.mrb[0].mxu0
    %1147 = vmatprep.mubr.f32.mxu0 0.0
    %v1148 = vand.u32 %v721, 4294901760
    %v1149 = vsub.f32 %v721, %v1148
    %v1150 = vand.u32 %v1149, 4294901760
    %1151 = vmatmul.mubr.f32.gmra.mrb[0].mxu0 %v1150
    %v1152 = vpop.f32.mrb[0].mxu0
    %v1153 = vadd.f32 %v1046, %v1152
    %v1154 = vpop.f32.mrb[0].mxu0
    %1155 = vdwg.mxu0
    %1156 = vmatprep.subr.mxu0 0.0
    %v1157 = vand.u32 %v49, 4294901760
    %v1158 = vsub.f32 %v49, %v1157
    %v1159 = vand.u32 %v1158, 4294901760
    %1160 = vmatpush1.msra.mxu0 %v1159
    %1161 = vmatprep.subr.mxu0 0.0
    %v1162 = vand.u32 %v50, 4294901760
    %v1163 = vsub.f32 %v50, %v1162
    %v1164 = vand.u32 %v1163, 4294901760
    %1165 = vmatpush1.msra.mxu0 %v1164
    %1166 = vmatprep.subr.mxu0 0.0
    %1167 = vmatpush1.msra.mxu0 0.0
    %1168 = vmatprep.subr.mxu0 0.0
    %1169 = vmatpush1.msra.mxu0 0.0
    %1170 = vmatprep.subr.mxu0 0.0
    %1171 = vmatpush1.msra.mxu0 0.0
    %1172 = vmatprep.subr.mxu0 0.0
    %1173 = vmatpush1.msra.mxu0 0.0
    %1174 = vmatprep.subr.mxu0 0.0
    %1175 = vmatpush1.msra.mxu0 0.0
    %1176 = vmatprep.subr.mxu0 0.0
    %1177 = vmatpush1.msra.mxu0 0.0
    %1178 = vmatprep.subr.mxu0 0.0
    %1179 = vmatpush1.msra.mxu0 0.0
    %1180 = vmatprep.subr.mxu0 0.0
    %1181 = vmatpush1.msra.mxu0 0.0
    %1182 = vmatprep.subr.mxu0 0.0
    %1183 = vmatpush1.msra.mxu0 0.0
    %1184 = vmatprep.subr.mxu0 0.0
    %1185 = vmatpush1.msra.mxu0 0.0
    %1186 = vmatprep.subr.mxu0 0.0
    %1187 = vmatpush1.msra.mxu0 0.0
    %1188 = vmatprep.subr.mxu0 0.0
    %1189 = vmatpush1.msra.mxu0 0.0
    %1190 = vmatprep.subr.mxu0 0.0
    %1191 = vmatpush1.msra.mxu0 0.0
    %1192 = vmatprep.subr.mxu0 0.0
    %1193 = vmatpush1.msra.mxu0 0.0
    %1194 = vmatprep.subr.mxu0 0.0
    %1195 = vmatpush1.msra.mxu0 0.0
    %1196 = vmatprep.subr.mxu0 0.0
    %1197 = vmatpush1.msra.mxu0 0.0
    %1198 = vmatprep.subr.mxu0 0.0
    %1199 = vmatpush1.msra.mxu0 0.0
    %1200 = vmatprep.subr.mxu0 0.0
    %1201 = vmatpush1.msra.mxu0 0.0
    %1202 = vmatprep.subr.mxu0 0.0
    %1203 = vmatpush1.msra.mxu0 0.0
    %1204 = vmatprep.subr.mxu0 0.0
    %1205 = vmatpush1.msra.mxu0 0.0
    %1206 = vmatprep.subr.mxu0 0.0
    %1207 = vmatpush1.msra.mxu0 0.0
    %1208 = vmatprep.subr.mxu0 0.0
    %1209 = vmatpush1.msra.mxu0 0.0
    %1210 = vmatprep.subr.mxu0 0.0
    %1211 = vmatpush1.msra.mxu0 0.0
    %1212 = vmatprep.subr.mxu0 0.0
    %1213 = vmatpush1.msra.mxu0 0.0
    %1214 = vmatprep.subr.mxu0 0.0
    %1215 = vmatpush1.msra.mxu0 0.0
    %1216 = vmatprep.subr.mxu0 0.0
    %1217 = vmatpush1.msra.mxu0 0.0
    %1218 = vmatprep.subr.mxu0 0.0
    %1219 = vmatpush1.msra.mxu0 0.0
    %1220 = vmatprep.subr.mxu0 0.0
    %1221 = vmatpush1.msra.mxu0 0.0
    %1222 = vmatprep.subr.mxu0 0.0
    %1223 = vmatpush1.msra.mxu0 0.0
    %1224 = vmatprep.subr.mxu0 0.0
    %1225 = vmatpush1.msra.mxu0 0.0
    %1226 = vmatprep.mubr.f32.mxu0 0.0
    %v1227 = vand.u32 %v709, 4294901760
    %1228 = vmatmul.mubr.f32.gmra.mrb[0].mxu0 %v1227
    %v1229 = vpop.f32.mrb[0].mxu0
    %v1230 = vadd.f32 %v1121, %v1229
    %v1231 = vpop.f32.mrb[0].mxu0
    %1232 = vmatprep.mubr.f32.mxu0 0.0
    %v1233 = vand.u32 %v712, 4294901760
    %1234 = vmatmul.mubr.f32.gmra.mrb[0].mxu0 %v1233
    %v1235 = vpop.f32.mrb[0].mxu0
    %v1236 = vadd.f32 %v1129, %v1235
    %v1237 = vpop.f32.mrb[0].mxu0
    %1238 = vmatprep.mubr.f32.mxu0 0.0
    %v1239 = vand.u32 %v715, 4294901760
    %1240 = vmatmul.mubr.f32.gmra.mrb[0].mxu0 %v1239
    %v1241 = vpop.f32.mrb[0].mxu0
    %v1242 = vadd.f32 %v1137, %v1241
    %v1243 = vpop.f32.mrb[0].mxu0
    %1244 = vmatprep.mubr.f32.mxu0 0.0
    %v1245 = vand.u32 %v718, 4294901760
    %1246 = vmatmul.mubr.f32.gmra.mrb[0].mxu0 %v1245
    %v1247 = vpop.f32.mrb[0].mxu0
    %v1248 = vadd.f32 %v1145, %v1247
    %v1249 = vpop.f32.mrb[0].mxu0
    %1250 = vmatprep.mubr.f32.mxu0 0.0
    %v1251 = vand.u32 %v721, 4294901760
    %1252 = vmatmul.mubr.f32.gmra.mrb[0].mxu0 %v1251
    %v1253 = vpop.f32.mrb[0].mxu0
    %v1254 = vadd.f32 %v1153, %v1253
    %v1255 = vpop.f32.mrb[0].mxu0
    %1256 = vdwg.mxu0
    %1257 = vmatprep.subr.mxu0 0.0
    %v1258 = vand.u32 %v49, 4294901760
    %1259 = vmatpush1.msra.mxu0 %v1258
    %1260 = vmatprep.subr.mxu0 0.0
    %v1261 = vand.u32 %v50, 4294901760
    %1262 = vmatpush1.msra.mxu0 %v1261
    %1263 = vmatprep.subr.mxu0 0.0
    %1264 = vmatpush1.msra.mxu0 0.0
    %1265 = vmatprep.subr.mxu0 0.0
    %1266 = vmatpush1.msra.mxu0 0.0
    %1267 = vmatprep.subr.mxu0 0.0
    %1268 = vmatpush1.msra.mxu0 0.0
    %1269 = vmatprep.subr.mxu0 0.0
    %1270 = vmatpush1.msra.mxu0 0.0
    %1271 = vmatprep.subr.mxu0 0.0
    %1272 = vmatpush1.msra.mxu0 0.0
    %1273 = vmatprep.subr.mxu0 0.0
    %1274 = vmatpush1.msra.mxu0 0.0
    %1275 = vmatprep.subr.mxu0 0.0
    %1276 = vmatpush1.msra.mxu0 0.0
    %1277 = vmatprep.subr.mxu0 0.0
    %1278 = vmatpush1.msra.mxu0 0.0
    %1279 = vmatprep.subr.mxu0 0.0
    %1280 = vmatpush1.msra.mxu0 0.0
    %1281 = vmatprep.subr.mxu0 0.0
    %1282 = vmatpush1.msra.mxu0 0.0
    %1283 = vmatprep.subr.mxu0 0.0
    %1284 = vmatpush1.msra.mxu0 0.0
    %1285 = vmatprep.subr.mxu0 0.0
    %1286 = vmatpush1.msra.mxu0 0.0
    %1287 = vmatprep.subr.mxu0 0.0
    %1288 = vmatpush1.msra.mxu0 0.0
    %1289 = vmatprep.subr.mxu0 0.0
    %1290 = vmatpush1.msra.mxu0 0.0
    %1291 = vmatprep.subr.mxu0 0.0
    %1292 = vmatpush1.msra.mxu0 0.0
    %1293 = vmatprep.subr.mxu0 0.0
    %1294 = vmatpush1.msra.mxu0 0.0
    %1295 = vmatprep.subr.mxu0 0.0
    %1296 = vmatpush1.msra.mxu0 0.0
    %1297 = vmatprep.subr.mxu0 0.0
    %1298 = vmatpush1.msra.mxu0 0.0
    %1299 = vmatprep.subr.mxu0 0.0
    %1300 = vmatpush1.msra.mxu0 0.0
    %1301 = vmatprep.subr.mxu0 0.0
    %1302 = vmatpush1.msra.mxu0 0.0
    %1303 = vmatprep.subr.mxu0 0.0
    %1304 = vmatpush1.msra.mxu0 0.0
    %1305 = vmatprep.subr.mxu0 0.0
    %1306 = vmatpush1.msra.mxu0 0.0
    %1307 = vmatprep.subr.mxu0 0.0
    %1308 = vmatpush1.msra.mxu0 0.0
    %1309 = vmatprep.subr.mxu0 0.0
    %1310 = vmatpush1.msra.mxu0 0.0
    %1311 = vmatprep.subr.mxu0 0.0
    %1312 = vmatpush1.msra.mxu0 0.0
    %1313 = vmatprep.subr.mxu0 0.0
    %1314 = vmatpush1.msra.mxu0 0.0
    %1315 = vmatprep.subr.mxu0 0.0
    %1316 = vmatpush1.msra.mxu0 0.0
    %1317 = vmatprep.subr.mxu0 0.0
    %1318 = vmatpush1.msra.mxu0 0.0
    %1319 = vmatprep.subr.mxu0 0.0
    %1320 = vmatpush1.msra.mxu0 0.0
    %1321 = vmatprep.subr.mxu0 0.0
    %1322 = vmatpush1.msra.mxu0 0.0
    %1323 = vmatprep.mubr.f32.mxu0 0.0
    %v1324 = vand.u32 %v709, 4294901760
    %1325 = vmatmul.mubr.f32.gmra.mrb[0].mxu0 %v1324
    %v1326 = vpop.f32.mrb[0].mxu0
    %v1327 = vadd.f32 %v1230, %v1326
    %v1328 = vpop.f32.mrb[0].mxu0
    %1329 = vmatprep.mubr.f32.mxu0 0.0
    %v1330 = vand.u32 %v712, 4294901760
    %1331 = vmatmul.mubr.f32.gmra.mrb[0].mxu0 %v1330
    %v1332 = vpop.f32.mrb[0].mxu0
    %v1333 = vadd.f32 %v1236, %v1332
    %v1334 = vpop.f32.mrb[0].mxu0
    %1335 = vmatprep.mubr.f32.mxu0 0.0
    %v1336 = vand.u32 %v715, 4294901760
    %1337 = vmatmul.mubr.f32.gmra.mrb[0].mxu0 %v1336
    %v1338 = vpop.f32.mrb[0].mxu0
    %v1339 = vadd.f32 %v1242, %v1338
    %v1340 = vpop.f32.mrb[0].mxu0
    %1341 = vmatprep.mubr.f32.mxu0 0.0
    %v1342 = vand.u32 %v718, 4294901760
    %1343 = vmatmul.mubr.f32.gmra.mrb[0].mxu0 %v1342
    %v1344 = vpop.f32.mrb[0].mxu0
    %v1345 = vadd.f32 %v1248, %v1344
    %v1346 = vpop.f32.mrb[0].mxu0
    %1347 = vmatprep.mubr.f32.mxu0 0.0
    %v1348 = vand.u32 %v721, 4294901760
    %1349 = vmatmul.mubr.f32.gmra.mrb[0].mxu0 %v1348
    %v1350 = vpop.f32.mrb[0].mxu0
    %v1351 = vadd.f32 %v1254, %v1350
    %v1352 = vpop.f32.mrb[0].mxu0
    %1353 = vdwg.mxu0
    %v1354 = vmul.f32 %v676, %v1327
    %v1355 = vmul.f32 %v682, %v1333
    %v1356 = vmul.f32 %v688, %v1339
    %v1357 = vmul.f32 %v694, %v1345
    %v1358 = vmul.f32 %v700, %v1351
    %v1359 = vadd.f32 %v1354, %v1355
    %v1360 = vadd.f32 %v1359, %v1356
    %v1361 = vadd.f32 %v1360, %v1357
    %vm1362 = vcmask 1040384
    %v1363 = vsel %vm1362, %v1358, 0.0
    %v1364 = vadd.f32 %v1361, %v1363
    %v1365 = vrot.slane %v1364, 4
    %v1366 = vadd.f32 %v1364, %v1365
    %v1367 = vrot.slane %v1366, 2
    %v1368 = vadd.f32 %v1366, %v1367
    %v1369 = vrot.slane %v1368, 1
    %v1370 = vadd.f32 %v1368, %v1369
    %v1371 = vmax.f32 %v1370, 0.0
    %v1372 = vand.u32 2147483647, %v1370
    %v1373 = vsub.f32 0.0, %v1372
    %v1374 = vmul.f32 %v1373, 1.442695
    %v1375 = vpow.pop %v1374
    %v1376 = vadd.f32 %v1375, 1.0
    %v1377 = vlog2.pop %v1376
    %v1378 = vmul.f32 %v1377, 0.6931472
    %v1379 = vadd.f32 %v1371, %v1378
    %1380 = vst [vmem:[#allocation2] sm:$0x1] %v1379
    // Predicated region
    $region14: #{tpu_custom_call.1} parent=1 // pred_check
      _
    $region15: #{tpu_custom_call.1} parent=1 // pred_check_branch
      %1382 = sbr.rel (0) target = $region17
    $region16: #{tpu_custom_call.1} parent=1 // pred_region
      %s1384 = ssub.s32 16, 16
      %1385 = vsyncadd [#allocation3], %s1384
      %s1387 = sshll.u32 [#allocation2], 4
      %s1388 = int_to_ptr.vmem [resolvable:$true] %s1387
      %1390 = dma.vmem_to_hbm [thread:$0]  %s1388, 16, %s3, [#allocation3]
    $region17: #{tpu_custom_call.1} parent=1 // pred_fallthru
      _
    // Predicated region
    $region18: #{tpu_custom_call.1} parent=1 // pred_check
      _
    $region19: #{tpu_custom_call.1} parent=1 // pred_check_branch
      %1392 = sbr.rel (0) target = $region21
    $region20: #{tpu_custom_call.1} parent=1 // pred_region
      %1393 = dma.done [#allocation3], 16
    $region21: #{tpu_custom_call.1} parent=1 // pred_fallthru
      _
    %1394 = vsyncpa [#allocation3], 1

</llo_original>
